<compile_context>
chip_gen: v5e
topology: v5e:2x2
jax: 0.10.0
libtpu: 0.0.40
codegen_flags: <defaults>
</compile_context>

<pallas_src>
import jax
import jax.numpy as jnp
from jax import lax
from jax.experimental import pallas as pl
from jax.experimental.pallas import tpu as pltpu


def _convlstm_kernel(w_ref, x_ref, c_ref, h_out_ref, c_out_ref):
    """One lane-dense column block of M = B*H*W pixels per grid step.

    w_ref: (4*Hd, K_pad)   flattened conv weights + bias column (matmul dtype)
    x_ref: (K_pad, Mb)     transposed im2col patches + ones row (matmul dtype)
    c_ref: (Hd, Mb)        current cell state, channel-major (lane dense)
    h_out_ref / c_out_ref: (Hd, Mb)
    """
    Hd = c_ref.shape[0]

    # Single MXU matmul computes conv + bias for all 4 gates of every pixel
    # in the block (contraction K_pad = 128, output lanes = Mb >= 128).
    acc = jnp.dot(w_ref[...], x_ref[...],
                  preferred_element_type=jnp.float32)        # (4*Hd, Mb) f32

    # torch.split channel order: i, f, o (sigmoid) then g (tanh).  Gate rows
    # sit on the sublane axis; slices at multiples of 8 are plain vreg picks.
    ifo = jax.nn.sigmoid(acc[:3 * Hd, :])
    g = jnp.tanh(acc[3 * Hd:, :])
    i = ifo[:Hd, :]
    f = ifo[Hd:2 * Hd, :]
    o = ifo[2 * Hd:3 * Hd, :]

    c_cur = c_ref[...].astype(jnp.float32)
    c_next = f * c_cur + i * g
    h_next = o * jnp.tanh(c_next)

    c_out_ref[...] = c_next.astype(c_out_ref.dtype)
    h_out_ref[...] = h_next.astype(h_out_ref.dtype)


def _pick_m_block(M, max_block=2048):
    """Largest power-of-two multiple of 128 that divides M while leaving >= 2
    grid steps (so v7x's two TensorCores both get work).  Falls back to a
    single block covering all of M.  Keeps per-block VMEM modest on v7x."""
    best = M
    blk = 128
    while blk <= max_block and 2 * blk <= M:
        if M % blk == 0:
            best = blk
        blk *= 2
    return best


def conv_lstm_cell_forward(input_nchw, h_nchw, c_nchw, weight_oihw, bias,
                           kernel_size, matmul_dtype=jnp.bfloat16):
    """Pallas ConvLSTMCell forward.

    input_nchw: (B, Cin, H, W)
    h_nchw, c_nchw: (B, Hd, H, W)
    weight_oihw: (4*Hd, Cin+Hd, KH, KW)   (PyTorch Conv2d layout)
    bias: (4*Hd,)
    Returns (h_next, c_next) in NCHW.
    """
    B, Cin, H, W = input_nchw.shape
    Hd = h_nchw.shape[1]
    KH, KW = kernel_size
    # PyTorch "same" padding (KH//2, KW//2) only matches this unfold for odd
    # kernels; be explicit instead of silently reading the wrong window.
    assert KH % 2 == 1 and KW % 2 == 1, "only odd kernel sizes are supported"

    C = Cin + Hd
    C4 = 4 * Hd
    M = B * H * W
    K = C * KH * KW
    K_pad = ((K + 1 + 127) // 128) * 128      # + 1 ones-row for the bias

    out_dtype = input_nchw.dtype

    # ---- wrapper-side glue (plain XLA): concat, pad, im2col, weight flatten.
    # TODO(synk): when the cell is driven inside a recurrent loop, keep h/c in
    # the channel-major (Hd, B*H*W) layout between timesteps to avoid these
    # per-step NCHW transposes (they are HBM round trips comparable in bytes
    # to the kernel itself).
    combined = jnp.concatenate([input_nchw, h_nchw], axis=1)       # (B, C, H, W)
    ph, pw = KH // 2, KW // 2
    combined_pad = jnp.pad(combined, ((0, 0), (0, 0), (ph, ph), (pw, pw)))

    # Transposed im2col: patches[k=(c,kh,kw), m=(b,y,x)] = pad[b,c,y+kh,x+kw].
    taps = [combined_pad[:, :, kh:kh + H, kw:kw + W]
            for kh in range(KH) for kw in range(KW)]               # (B,C,H,W) x KH*KW
    patches = jnp.stack(taps, axis=2)                              # (B, C, KH*KW, H, W)
    patches = jnp.transpose(patches, (1, 2, 0, 3, 4)).reshape(K, M)

    ones_row = jnp.ones((1, M), dtype=patches.dtype)               # bias row
    zpad_rows = jnp.zeros((K_pad - K - 1, M), dtype=patches.dtype)
    patches_aug = jnp.concatenate([patches, ones_row, zpad_rows], axis=0)
    patches_aug = patches_aug.astype(matmul_dtype)                 # (K_pad, M)

    # Weights: (4*Hd, C, KH, KW) -> (4*Hd, K) with the same (c, kh, kw) order,
    # then append the bias as an extra contraction column + zero padding.
    w_flat = weight_oihw.reshape(C4, K)
    bias_col = bias.reshape(C4, 1).astype(w_flat.dtype)
    zpad_cols = jnp.zeros((C4, K_pad - K - 1), dtype=w_flat.dtype)
    w_aug = jnp.concatenate([w_flat, bias_col, zpad_cols], axis=1)
    w_aug = w_aug.astype(matmul_dtype)                             # (C4, K_pad)

    # Cell state, channel-major and lane dense: (Hd, B*H*W).
    c_t = jnp.transpose(c_nchw, (1, 0, 2, 3)).reshape(Hd, M)

    m_blk = _pick_m_block(M)
    grid = (M // m_blk,)

    out_shapes = (
        jax.ShapeDtypeStruct((Hd, M), out_dtype),   # h_next (channel-major)
        jax.ShapeDtypeStruct((Hd, M), out_dtype),   # c_next (channel-major)
    )

    h_t, c_t_next = pl.pallas_call(
        _convlstm_kernel,
        out_shape=out_shapes,
        grid_spec=pltpu.PrefetchScalarGridSpec(
            num_scalar_prefetch=0,
            grid=grid,
            in_specs=[
                # Weights: constant index_map -> not re-staged per step.
                pl.BlockSpec((C4, K_pad), lambda m: (0, 0)),
                # im2col patches: lane-dense column block per step.
                pl.BlockSpec((K_pad, m_blk), lambda m: (0, m)),
                # Cell state: lane-dense column block per step.
                pl.BlockSpec((Hd, m_blk), lambda m: (0, m)),
            ],
            out_specs=[
                pl.BlockSpec((Hd, m_blk), lambda m: (0, m)),
                pl.BlockSpec((Hd, m_blk), lambda m: (0, m)),
            ],
        ),
        compiler_params=pltpu.CompilerParams(
            dimension_semantics=("parallel",)),
    )(w_aug, patches_aug, c_t)

    # Back to NCHW to match PyTorch semantics (row-major reshape + transpose).
    h_next = jnp.transpose(h_t.reshape(Hd, B, H, W), (1, 0, 2, 3))
    c_next = jnp.transpose(c_t_next.reshape(Hd, B, H, W), (1, 0, 2, 3))
    return h_next, c_next


def _reference_forward(input_nchw, h_nchw, c_nchw, weight_oihw, bias,
                       kernel_size):
    """Pure-JAX reference (mirrors the PyTorch module) for validation."""
    KH, KW = kernel_size
    combined = jnp.concatenate([input_nchw, h_nchw], axis=1)
    conv = lax.conv_general_dilated(
        combined, weight_oihw, window_strides=(1, 1),
        padding=((KH // 2, KH // 2), (KW // 2, KW // 2)),
        dimension_numbers=("NCHW", "OIHW", "NCHW"))
    conv = conv + bias[None, :, None, None]
    Hd = h_nchw.shape[1]
    cc_i, cc_f, cc_o, cc_g = jnp.split(conv, 4, axis=1)
    i = jax.nn.sigmoid(cc_i)
    f = jax.nn.sigmoid(cc_f)
    o = jax.nn.sigmoid(cc_o)
    g = jnp.tanh(cc_g)
    c_next = f * c_nchw + i * g
    h_next = o * jnp.tanh(c_next)
    return h_next, c_next


if __name__ == "__main__":
    # Module config (small, consistent with ConvLSTMCell.__init__).
    B = 2
    input_dim = 4
    hidden_dim = 8
    H = W = 16
    kernel_size = (3, 3)

    key = jax.random.PRNGKey(0)
    k_x, k_h, k_c, k_w, k_b = jax.random.split(key, 5)

    x = jax.random.normal(k_x, (B, input_dim, H, W), dtype=jnp.float32)
    h_cur = jax.random.normal(k_h, (B, hidden_dim, H, W), dtype=jnp.float32)
    c_cur = jax.random.normal(k_c, (B, hidden_dim, H, W), dtype=jnp.float32)

    # Deterministic parameter init matching nn.Conv2d shapes:
    # weight (4*hidden, input_dim+hidden, KH, KW), bias (4*hidden,).
    C_in = input_dim + hidden_dim
    fan_in = C_in * kernel_size[0] * kernel_size[1]
    bound = 1.0 / jnp.sqrt(fan_in)
    weight = jax.random.uniform(
        k_w, (4 * hidden_dim, C_in, kernel_size[0], kernel_size[1]),
        minval=-bound, maxval=bound, dtype=jnp.float32)
    bias = jax.random.uniform(
        k_b, (4 * hidden_dim,), minval=-bound, maxval=bound,
        dtype=jnp.float32)

    # bf16 MXU inputs (f32 accumulation + f32 gate math) -> relaxed tolerance.
    h_next, c_next = conv_lstm_cell_forward(
        x, h_cur, c_cur, weight, bias, kernel_size,
        matmul_dtype=jnp.bfloat16)
    jax.block_until_ready((h_next, c_next))

    h_ref, c_ref = _reference_forward(x, h_cur, c_cur, weight, bias,
                                      kernel_size)
    assert jnp.allclose(h_next, h_ref, atol=2e-2, rtol=2e-2)
    assert jnp.allclose(c_next, c_ref, atol=2e-2, rtol=2e-2)

    # Also check the exact (f32 matmul) path against the tight tolerance.
    h32, c32 = conv_lstm_cell_forward(
        x, h_cur, c_cur, weight, bias, kernel_size,
        matmul_dtype=jnp.float32)
    jax.block_until_ready((h32, c32))
    assert jnp.allclose(h32, h_ref, atol=1e-4, rtol=1e-4)
    assert jnp.allclose(c32, c_ref, atol=1e-4, rtol=1e-4)

    print("KERNEL_OK")
</pallas_src>

<mosaic_0001>
module attributes {stable_mosaic.version = 11 : i64} {
  func.func @_convlstm_kernel(%arg0: i32, %arg1: memref<32x128xbf16, #tpu.memory_space<vmem>>, %arg2: memref<128x256xbf16, #tpu.memory_space<vmem>>, %arg3: memref<8x256xf32, #tpu.memory_space<vmem>>, %arg4: memref<8x256xf32, #tpu.memory_space<vmem>>, %arg5: memref<8x256xf32, #tpu.memory_space<vmem>>) attributes {dimension_semantics = [#tpu.dimension_semantics<parallel>], iteration_bounds = array<i64: 2>, scalar_prefetch = 0 : i64, scratch_operands = 0 : i64, tpu.core_type = #tpu.core_type<tc>, window_params = [{pipeline_mode = #tpu.pipeline_mode<synchronous>, transform_indices = @transform_0, window_bounds = array<i64: 32, 128>}, {transform_indices = @transform_1, window_bounds = array<i64: 128, 256>}, {transform_indices = @transform_2, window_bounds = array<i64: 8, 256>}, {transform_indices = @transform_3, window_bounds = array<i64: 8, 256>}, {transform_indices = @transform_4, window_bounds = array<i64: 8, 256>}]} {
    %c0 = arith.constant 0 : index
    %c0_0 = arith.constant 0 : index
    %0 = vector.load %arg1[%c0, %c0_0] : memref<32x128xbf16, #tpu.memory_space<vmem>>, vector<32x128xbf16>
    %c0_1 = arith.constant 0 : index
    %c0_2 = arith.constant 0 : index
    %1 = vector.load %arg2[%c0_1, %c0_2] : memref<128x256xbf16, #tpu.memory_space<vmem>>, vector<128x256xbf16>
    %cst = arith.constant dense<0.000000e+00> : vector<32x256xf32>
    %2 = tpu.matmul %0, %1, %cst {dimension_numbers = #tpu.dot_dimension_numbers<[1], [0], [0], [1], [0, 0, 1, 1], [], []>} : vector<32x128xbf16>, vector<128x256xbf16>, vector<32x256xf32> -> vector<32x256xf32>
    %3 = vector.extract_strided_slice %2 {offsets = [0, 0], sizes = [24, 256], strides = [1, 1]} : vector<32x256xf32> to vector<24x256xf32>
    %4 = arith.negf %3 : vector<24x256xf32>
    %5 = math.exp %4 : vector<24x256xf32>
    %cst_3 = arith.constant 1.000000e+00 : f32
    %6 = vector.broadcast %cst_3 : f32 to vector<24x256xf32>
    %7 = arith.addf %6, %5 : vector<24x256xf32>
    %8 = arith.divf %6, %7 : vector<24x256xf32>
    %9 = vector.extract_strided_slice %2 {offsets = [24, 0], sizes = [8, 256], strides = [1, 1]} : vector<32x256xf32> to vector<8x256xf32>
    %10 = math.tanh %9 : vector<8x256xf32>
    %11 = vector.extract_strided_slice %8 {offsets = [0, 0], sizes = [8, 256], strides = [1, 1]} : vector<24x256xf32> to vector<8x256xf32>
    %12 = vector.extract_strided_slice %8 {offsets = [8, 0], sizes = [8, 256], strides = [1, 1]} : vector<24x256xf32> to vector<8x256xf32>
    %13 = vector.extract_strided_slice %8 {offsets = [16, 0], sizes = [8, 256], strides = [1, 1]} : vector<24x256xf32> to vector<8x256xf32>
    %c0_4 = arith.constant 0 : index
    %c0_5 = arith.constant 0 : index
    %14 = vector.load %arg3[%c0_4, %c0_5] : memref<8x256xf32, #tpu.memory_space<vmem>>, vector<8x256xf32>
    %15 = arith.mulf %12, %14 : vector<8x256xf32>
    %16 = arith.mulf %11, %10 : vector<8x256xf32>
    %17 = arith.addf %15, %16 : vector<8x256xf32>
    %18 = math.tanh %17 : vector<8x256xf32>
    %19 = arith.mulf %13, %18 : vector<8x256xf32>
    %c0_6 = arith.constant 0 : index
    %c0_7 = arith.constant 0 : index
    %20 = vector.load %arg5[%c0_6, %c0_7] : memref<8x256xf32, #tpu.memory_space<vmem>>, vector<8x256xf32>
    tpu.vector_store %arg5[%c0_6, %c0_7], %17 {strides = array<i32>} : memref<8x256xf32, #tpu.memory_space<vmem>>, vector<8x256xf32>,
    %c0_8 = arith.constant 0 : index
    %c0_9 = arith.constant 0 : index
    %21 = vector.load %arg4[%c0_8, %c0_9] : memref<8x256xf32, #tpu.memory_space<vmem>>, vector<8x256xf32>
    tpu.vector_store %arg4[%c0_8, %c0_9], %19 {strides = array<i32>} : memref<8x256xf32, #tpu.memory_space<vmem>>, vector<8x256xf32>,
    return
  }
  func.func @transform_0(%arg0: i32) -> (i32, i32) {
    %c0_i32 = arith.constant 0 : i32
    %c0_i32_0 = arith.constant 0 : i32
    %c0_i32_1 = arith.constant 0 : i32
    return %c0_i32, %c0_i32_0 : i32, i32
  }
  func.func @transform_1(%arg0: i32) -> (i32, i32) {
    %c0_i32 = arith.constant 0 : i32
    %c0_i32_0 = arith.constant 0 : i32
    return %c0_i32, %arg0 : i32, i32
  }
  func.func @transform_2(%arg0: i32) -> (i32, i32) {
    %c0_i32 = arith.constant 0 : i32
    %c0_i32_0 = arith.constant 0 : i32
    return %c0_i32, %arg0 : i32, i32
  }
  func.func @transform_3(%arg0: i32) -> (i32, i32) {
    %c0_i32 = arith.constant 0 : i32
    %c0_i32_0 = arith.constant 0 : i32
    return %c0_i32, %arg0 : i32, i32
  }
  func.func @transform_4(%arg0: i32) -> (i32, i32) {
    %c0_i32 = arith.constant 0 : i32
    %c0_i32_0 = arith.constant 0 : i32
    return %c0_i32, %arg0 : i32, i32
  }
}

</mosaic_0001>

<llo_original>
// kernel: tpu_custom_call.1
$region0: #{tpu_custom_call.1}
  #allocation0 [shape = 'u32[]', space=smem, size = 0x4, offset = 0x4, fixed_abs, tag = 'smem constant byte address 0x4 - core index']
  #allocation1 [shape = 'u32[72,128]{1,0:T(1,128)}', space=vmem, size = 0x9000, scoped, tag = 'internal scratch']
  %s0 = inlined_call_operand.hbm [shape: bf16[32,128], index: 0, kind: input, shape index: {}]
  %s1 = inlined_call_operand.hbm [shape: bf16[128,512], index: 1, kind: input, shape index: {}]
  %s2 = inlined_call_operand.hbm [shape: f32[8,512], index: 2, kind: input, shape index: {}]
  %s3 = inlined_call_operand.hbm [shape: f32[8,512], index: 3, kind: output, shape index: {0}]
  %s4 = inlined_call_operand.hbm [shape: f32[8,512], index: 4, kind: output, shape index: {1}]
  %5 = xla_tuple %s3, %s4
  %s6 = sld [smem:[#allocation0]]
  $region65: #{tpu_custom_call.1} parent=0
    _
  %s8 = ssub.s32 1, %s6
  %s9 = scalar_select 0, %s8, %s6
  $region1: #{tpu_custom_call.1} parent=0
    #allocation2 [shape = 'u8[8192]{0}', space=vmem, size = 0x2000, scoped, tag = 'input window, operand 0, single buffered']
    #allocation3 [shape = 's32[2]{0}', space=sflag, size = 0x8, scoped, tag = 'scoped memory for tpu_custom_call.1']
    #allocation4 [shape = 's32[2]{0}', space=sflag, size = 0x8, scoped, tag = 'scoped memory for tpu_custom_call.1']
    #allocation5 [shape = 'u8[131072]{0}', space=vmem, size = 0x20000, scoped, tag = 'input window, operand 1']
    #allocation6 [shape = 's32[2]{0}', space=sflag, size = 0x8, scoped, tag = 'scoped memory for tpu_custom_call.1']
    #allocation7 [shape = 'u8[16384]{0}', space=vmem, size = 0x4000, scoped, tag = 'input window, operand 2']
    #allocation8 [shape = 'u8[16384]{0}', space=vmem, size = 0x4000, scoped, tag = 'output window, operand 0']
    #allocation9 [shape = 'u8[16384]{0}', space=vmem, size = 0x4000, scoped, tag = 'output window, operand 1']
    #allocation10 [shape = 's32[2]{0}', space=sflag, size = 0x8, scoped, tag = 'scoped memory for tpu_custom_call.1']
    %10 = vsyncpa [#allocation3], 0
    %11 = vsyncpa [#allocation6], 0
    %s12 = scalar_lea.sflag [#allocation6], 1
    %13 = vsyncpa %s12, 0
    %14 = vsyncpa [#allocation4], 0
    %s15 = scalar_lea.sflag [#allocation4], 1
    %16 = vsyncpa %s15, 0
    %17 = vsyncpa [#allocation10], 0
    %s18 = scalar_lea.sflag [#allocation10], 1
    %19 = vsyncpa %s18, 0
    loop: start=0, step=1, limit=4
    $region2: #{tpu_custom_call.1} parent=1 // loop_pre_header
      _
    $region3: #{tpu_custom_call.1} parent=1 // loop_header
      %s21 = sphi 0, %s25
      %p22 = scmp.ge.s32.totalorder %s21, 4
      %s29 = sphi 0, %s29
      %s31 = sphi 0, %s29
      %s32 = sphi 0, %s31
      %s46 = sphi 0, %s32
      %s52 = sphi 0, %s54
      %s55 = sphi 0, %s52
      %s56 = sphi 0, %s55
      %s72 = sphi 0, %s56
      %s78 = sphi 0, %s80
      %s81 = sphi 0, %s78
      %s82 = sphi 0, %s81
      %s98 = sphi 0, %s82
      %s104 = sphi 0, %s106
      %s107 = sphi 0, %s104
      %s108 = sphi 0, %s107
      %s124 = sphi 0, %s108
      %s130 = sphi 0, %s132
      %s133 = sphi 0, %s130
      %s134 = sphi 0, %s133
      %s150 = sphi 0, %s134
    $region4: #{tpu_custom_call.1} parent=1 // loop_header_branch
      %24 = sbr.rel (%p22) target = $region8
    $region5: #{tpu_custom_call.1} parent=1 // loop_body
      %s26 = ssub.s32 %s21, 1
      %s27 = ssub.s32 %s21, 2
      %s28 = sadd.s32 %s21, 1
      %s30 = sadd.s32 %s29, 1
      %p33 = scmp.eq.s32.totalorder %s21, 1
      %p34 = scmp.ne.s32.totalorder %s29, %s31
      %p35 = scmp.eq.s32.totalorder %s21, 0
      %p36 = por %p34, %p35
      %p37 = scmp.ne.s32.totalorder %s29, %s31
      %p38 = scmp.eq.s32.totalorder %s26, 1
      %p39 = por %p37, %p38
      %p40 = scmp.ne.s32.totalorder %s31, %s32
      %p41 = scmp.eq.s32.totalorder %s26, 0
      %p42 = por %p40, %p41
      %p43 = scmp.ne.s32.totalorder %s31, %s32
      %p44 = scmp.eq.s32.totalorder %s27, 1
      %p45 = por %p43, %p44
      %p47 = scmp.ne.s32.totalorder %s32, %s46
      %p48 = scmp.eq.s32.totalorder %s27, 0
      %p49 = por %p47, %p48
      %s50 = ssub.s32 %s21, %s28
      %p51 = scmp.eq.s32.totalorder %s50, 0
      %s53 = sadd.s32 %s52, 1
      %s54 = scalar_select %p51, %s52, %s53
      %p57 = pneg %p51
      %p58 = scmp.eq.s32.totalorder %s21, 1
      %p59 = por %p57, %p58
      %p60 = scmp.ne.s32.totalorder %s52, %s55
      %p61 = scmp.eq.s32.totalorder %s21, 0
      %p62 = por %p60, %p61
      %p63 = scmp.ne.s32.totalorder %s52, %s55
      %p64 = scmp.eq.s32.totalorder %s26, 1
      %p65 = por %p63, %p64
      %p66 = scmp.ne.s32.totalorder %s55, %s56
      %p67 = scmp.eq.s32.totalorder %s26, 0
      %p68 = por %p66, %p67
      %p69 = scmp.ne.s32.totalorder %s55, %s56
      %p70 = scmp.eq.s32.totalorder %s27, 1
      %p71 = por %p69, %p70
      %p73 = scmp.ne.s32.totalorder %s56, %s72
      %p74 = scmp.eq.s32.totalorder %s27, 0
      %p75 = por %p73, %p74
      %s76 = ssub.s32 %s21, %s28
      %p77 = scmp.eq.s32.totalorder %s76, 0
      %s79 = sadd.s32 %s78, 1
      %s80 = scalar_select %p77, %s78, %s79
      %p83 = pneg %p77
      %p84 = scmp.eq.s32.totalorder %s21, 1
      %p85 = por %p83, %p84
      %p86 = scmp.ne.s32.totalorder %s78, %s81
      %p87 = scmp.eq.s32.totalorder %s21, 0
      %p88 = por %p86, %p87
      %p89 = scmp.ne.s32.totalorder %s78, %s81
      %p90 = scmp.eq.s32.totalorder %s26, 1
      %p91 = por %p89, %p90
      %p92 = scmp.ne.s32.totalorder %s81, %s82
      %p93 = scmp.eq.s32.totalorder %s26, 0
      %p94 = por %p92, %p93
      %p95 = scmp.ne.s32.totalorder %s81, %s82
      %p96 = scmp.eq.s32.totalorder %s27, 1
      %p97 = por %p95, %p96
      %p99 = scmp.ne.s32.totalorder %s82, %s98
      %p100 = scmp.eq.s32.totalorder %s27, 0
      %p101 = por %p99, %p100
      %s102 = ssub.s32 %s21, %s28
      %p103 = scmp.eq.s32.totalorder %s102, 0
      %s105 = sadd.s32 %s104, 1
      %s106 = scalar_select %p103, %s104, %s105
      %p109 = pneg %p103
      %p110 = scmp.eq.s32.totalorder %s21, 1
      %p111 = por %p109, %p110
      %p112 = scmp.ne.s32.totalorder %s104, %s107
      %p113 = scmp.eq.s32.totalorder %s21, 0
      %p114 = por %p112, %p113
      %p115 = scmp.ne.s32.totalorder %s104, %s107
      %p116 = scmp.eq.s32.totalorder %s26, 1
      %p117 = por %p115, %p116
      %p118 = scmp.ne.s32.totalorder %s107, %s108
      %p119 = scmp.eq.s32.totalorder %s26, 0
      %p120 = por %p118, %p119
      %p121 = scmp.ne.s32.totalorder %s107, %s108
      %p122 = scmp.eq.s32.totalorder %s27, 1
      %p123 = por %p121, %p122
      %p125 = scmp.ne.s32.totalorder %s108, %s124
      %p126 = scmp.eq.s32.totalorder %s27, 0
      %p127 = por %p125, %p126
      %s128 = ssub.s32 %s21, %s28
      %p129 = scmp.eq.s32.totalorder %s128, 0
      %s131 = sadd.s32 %s130, 1
      %s132 = scalar_select %p129, %s130, %s131
      %p135 = pneg %p129
      %p136 = scmp.eq.s32.totalorder %s21, 1
      %p137 = por %p135, %p136
      %p138 = scmp.ne.s32.totalorder %s130, %s133
      %p139 = scmp.eq.s32.totalorder %s21, 0
      %p140 = por %p138, %p139
      %p141 = scmp.ne.s32.totalorder %s130, %s133
      %p142 = scmp.eq.s32.totalorder %s26, 1
      %p143 = por %p141, %p142
      %p144 = scmp.ne.s32.totalorder %s133, %s134
      %p145 = scmp.eq.s32.totalorder %s26, 0
      %p146 = por %p144, %p145
      %p147 = scmp.ne.s32.totalorder %s133, %s134
      %p148 = scmp.eq.s32.totalorder %s27, 1
      %p149 = por %p147, %p148
      %p151 = scmp.ne.s32.totalorder %s134, %s150
      %p152 = scmp.eq.s32.totalorder %s27, 0
      %p153 = por %p151, %p152
      %p154 = scmp.le.s32.totalorder 1, %s21
      %p155 = scmp.lt.s32.totalorder %s21, 3
      %p156 = pnand %p154, %p155
      %p157 = pneg %p156
      // Predicated region
      $region9: #{tpu_custom_call.1} parent=5 // pred_check
        _
      $region10: #{tpu_custom_call.1} parent=5 // pred_check_branch
        %159 = sbr.rel (%p156) target = $region12
      $region11: #{tpu_custom_call.1} parent=5 // pred_region
        %s160 = ssub.s32 %s21, 1
        // Predicated region
        $region13: #{tpu_custom_call.1} parent=11 // pred_check
          %p161 = pneg %p42
        $region14: #{tpu_custom_call.1} parent=11 // pred_check_branch
          %163 = sbr.rel (%p161) target = $region16
        $region15: #{tpu_custom_call.1} parent=11 // pred_region
          %165 = vsyncadd [#allocation3], 0
          %s166 = sshll.u32 %s0, 4
          %s167 = int_to_ptr.hbm [resolvable:$true] %s166
          %s168 = sshll.u32 [#allocation2], 4
          %s169 = int_to_ptr.vmem [resolvable:$true] %s168
          %174 = dma.hbm_to_vmem [thread:$0]  %s167, 256, %s169, [#allocation3], 64, 64, 4
        $region16: #{tpu_custom_call.1} parent=11 // pred_fallthru
          _
      $region12: #{tpu_custom_call.1} parent=5 // pred_fallthru
        _
      %p175 = scmp.lt.s32.totalorder %s21, 2
      // Predicated region
      $region17: #{tpu_custom_call.1} parent=5 // pred_check
        %p176 = pneg %p175
      $region18: #{tpu_custom_call.1} parent=5 // pred_check_branch
        %178 = sbr.rel (%p176) target = $region20
      $region19: #{tpu_custom_call.1} parent=5 // pred_region
        // Predicated region
        $region21: #{tpu_custom_call.1} parent=19 // pred_check
          %p179 = pneg %p62
        $region22: #{tpu_custom_call.1} parent=19 // pred_check_branch
          %181 = sbr.rel (%p179) target = $region24
        $region23: #{tpu_custom_call.1} parent=19 // pred_region
          %s182 = sand.u32 %s21, 1
          %s183 = scalar_lea.sflag [#allocation6], %s182
          %s184 = sand.u32 %s52, 1
          %s185 = smul.addr %s184, 128
          %s186 = scalar_lea.vmem [#allocation5], %s185
          %s187 = smul.u32 2, %s21
          %189 = vsyncadd %s183, 0
          %s190 = smul.addr %s187, 4
          %s191 = scalar_lea.hbm %s1, %s190
          %s192 = sshll.u32 %s191, 4
          %s193 = int_to_ptr.hbm [resolvable:$true] %s192
          %s194 = sshll.u32 %s186, 4
          %s195 = int_to_ptr.vmem [resolvable:$true] %s194
          %200 = dma.hbm_to_vmem [thread:$0]  %s193, 2048, %s195, %s183, 256, 128, 8
        $region24: #{tpu_custom_call.1} parent=19 // pred_fallthru
          _
        // Predicated region
        $region25: #{tpu_custom_call.1} parent=19 // pred_check
          %p201 = pneg %p88
        $region26: #{tpu_custom_call.1} parent=19 // pred_check_branch
          %203 = sbr.rel (%p201) target = $region28
        $region27: #{tpu_custom_call.1} parent=19 // pred_region
          %s204 = sand.u32 %s21, 1
          %s205 = scalar_lea.sflag [#allocation6], %s204
          %s206 = sand.u32 %s78, 1
          %s207 = smul.addr %s206, 16
          %s208 = scalar_lea.vmem [#allocation7], %s207
          %s209 = smul.u32 2, %s21
          %211 = vsyncadd %s205, 0
          %s212 = smul.addr %s209, 8
          %s213 = scalar_lea.hbm %s2, %s212
          %s215 = sshll.u32 %s213, 4
          %s216 = int_to_ptr.hbm [resolvable:$true] %s215
          %s217 = sshll.u32 %s208, 4
          %s218 = int_to_ptr.vmem [resolvable:$true] %s217
          %220 = dma.hbm_to_vmem [thread:$0]  %s216, 256, %s218, %s205
        $region28: #{tpu_custom_call.1} parent=19 // pred_fallthru
          _
      $region20: #{tpu_custom_call.1} parent=5 // pred_fallthru
        _
      %p221 = scmp.le.s32.totalorder 1, %s21
      %p222 = scmp.lt.s32.totalorder %s21, 3
      %p223 = pnand %p221, %p222
      %p224 = pneg %p223
      // Predicated region
      $region29: #{tpu_custom_call.1} parent=5 // pred_check
        _
      $region30: #{tpu_custom_call.1} parent=5 // pred_check_branch
        %226 = sbr.rel (%p223) target = $region32
      $region31: #{tpu_custom_call.1} parent=5 // pred_region
        %s227 = ssub.s32 %s21, 1
        // Predicated region
        $region33: #{tpu_custom_call.1} parent=31 // pred_check
          %p228 = pneg %p42
        $region34: #{tpu_custom_call.1} parent=31 // pred_check_branch
          %230 = sbr.rel (%p228) target = $region36
        $region35: #{tpu_custom_call.1} parent=31 // pred_region
          %232 = dma.done [#allocation3], 256
        $region36: #{tpu_custom_call.1} parent=31 // pred_fallthru
          _
        %s233 = sand.u32 %s26, 1
        %s234 = scalar_lea.sflag [#allocation6], %s233
        %s235 = sand.u32 %s55, 1
        %s236 = smul.addr %s235, 128
        %s237 = scalar_lea.vmem [#allocation5], %s236
        // Predicated region
        $region37: #{tpu_custom_call.1} parent=31 // pred_check
          %p238 = pneg %p68
        $region38: #{tpu_custom_call.1} parent=31 // pred_check_branch
          %240 = sbr.rel (%p238) target = $region40
        $region39: #{tpu_custom_call.1} parent=31 // pred_region
          %242 = dma.done %s234, 2048
        $region40: #{tpu_custom_call.1} parent=31 // pred_fallthru
          _
        %s243 = sand.u32 %s26, 1
        %s244 = scalar_lea.sflag [#allocation6], %s243
        %s245 = sand.u32 %s81, 1
        %s246 = smul.addr %s245, 16
        %s247 = scalar_lea.vmem [#allocation7], %s246
        // Predicated region
        $region41: #{tpu_custom_call.1} parent=31 // pred_check
          %p248 = pneg %p94
        $region42: #{tpu_custom_call.1} parent=31 // pred_check_branch
          %250 = sbr.rel (%p248) target = $region44
        $region43: #{tpu_custom_call.1} parent=31 // pred_region
          %252 = dma.done %s244, 256
        $region44: #{tpu_custom_call.1} parent=31 // pred_fallthru
          _
        %p253 = pneg %p42
        %p254 = pneg %p39
        %s255 = sand.u32 %s26, 1
        %s256 = scalar_lea.sflag [#allocation6], %s255
        %s257 = sand.u32 %s55, 1
        %s258 = smul.addr %s257, 128
        %s259 = scalar_lea.vmem [#allocation5], %s258
        %p260 = pneg %p68
        %p261 = pneg %p65
        %s262 = sand.u32 %s26, 1
        %s263 = scalar_lea.sflag [#allocation6], %s262
        %s264 = sand.u32 %s81, 1
        %s265 = smul.addr %s264, 16
        %s266 = scalar_lea.vmem [#allocation7], %s265
        %p267 = pneg %p94
        %p268 = pneg %p91
        %p269 = pneg %p120
        %p270 = pneg %p117
        %s271 = sand.u32 %s107, 1
        %s272 = scalar_lea.sflag [#allocation4], %s271
        %s273 = sand.u32 %s107, 1
        %s274 = smul.addr %s273, 16
        %s275 = scalar_lea.vmem [#allocation8], %s274
        %p276 = pneg %p146
        %p277 = pneg %p143
        %s278 = sand.u32 %s133, 1
        %s279 = scalar_lea.sflag [#allocation10], %s278
        %s280 = sand.u32 %s133, 1
        %s281 = smul.addr %s280, 16
        %s282 = scalar_lea.vmem [#allocation9], %s281
        %s283 = smul.u32 2, %s26
        %s284 = smul.u32 2, %s26
        %s285 = smul.u32 2, %s26
        %s286 = smul.u32 2, %s26
        %v287 = vld [vmem:[#allocation2] sm:$0xf]
        %v288 = vld [vmem:[#allocation2 + $0x4] sm:$0xf]
        %v289 = vld [vmem:[#allocation2 + $0x8] sm:$0xf]
        %v290 = vld [vmem:[#allocation2 + $0xc] sm:$0xf]
        %v291 = vld [vmem:[%s237] sm:$0xff]
        %v292 = vld [vmem:[%s237 + $0x8] sm:$0xff]
        %v293 = vld [vmem:[%s237 + $0x10] sm:$0xff]
        %v294 = vld [vmem:[%s237 + $0x18] sm:$0xff]
        %v295 = vld [vmem:[%s237 + $0x20] sm:$0xff]
        %v296 = vld [vmem:[%s237 + $0x28] sm:$0xff]
        %v297 = vld [vmem:[%s237 + $0x30] sm:$0xff]
        %v298 = vld [vmem:[%s237 + $0x38] sm:$0xff]
        %v299 = vld [vmem:[%s237 + $0x40] sm:$0xff]
        %v300 = vld [vmem:[%s237 + $0x48] sm:$0xff]
        %v301 = vld [vmem:[%s237 + $0x50] sm:$0xff]
        %v302 = vld [vmem:[%s237 + $0x58] sm:$0xff]
        %v303 = vld [vmem:[%s237 + $0x60] sm:$0xff]
        %v304 = vld [vmem:[%s237 + $0x68] sm:$0xff]
        %v305 = vld [vmem:[%s237 + $0x70] sm:$0xff]
        %v306 = vld [vmem:[%s237 + $0x78] sm:$0xff]
        %v311 = vunpack.c.l.b16 %v287
        %v312 = vunpack.c.l.b16 %v288
        %v313 = vunpack.c.l.b16 %v289
        %v314 = vunpack.c.l.b16 %v290
        %v315 = vpack.c.b16 %v312, %v311
        %v316 = vpack.c.b16 %v314, %v313
        %v335 = vunpack.c.l.b16 %v291
        %v336 = vunpack.c.h.b16 %v291
        %v337 = vunpack.c.l.b16 %v292
        %v338 = vunpack.c.h.b16 %v292
        %v339 = vunpack.c.l.b16 %v293
        %v340 = vunpack.c.h.b16 %v293
        %v341 = vunpack.c.l.b16 %v294
        %v342 = vunpack.c.h.b16 %v294
        %v343 = vunpack.c.l.b16 %v295
        %v344 = vunpack.c.h.b16 %v295
        %v345 = vunpack.c.l.b16 %v296
        %v346 = vunpack.c.h.b16 %v296
        %v347 = vunpack.c.l.b16 %v297
        %v348 = vunpack.c.h.b16 %v297
        %v349 = vunpack.c.l.b16 %v298
        %v350 = vunpack.c.h.b16 %v298
        %v351 = vunpack.c.l.b16 %v299
        %v352 = vunpack.c.h.b16 %v299
        %v353 = vunpack.c.l.b16 %v300
        %v354 = vunpack.c.h.b16 %v300
        %v355 = vunpack.c.l.b16 %v301
        %v356 = vunpack.c.h.b16 %v301
        %v357 = vunpack.c.l.b16 %v302
        %v358 = vunpack.c.h.b16 %v302
        %v359 = vunpack.c.l.b16 %v303
        %v360 = vunpack.c.h.b16 %v303
        %v361 = vunpack.c.l.b16 %v304
        %v362 = vunpack.c.h.b16 %v304
        %v363 = vunpack.c.l.b16 %v305
        %v364 = vunpack.c.h.b16 %v305
        %v365 = vunpack.c.l.b16 %v306
        %v366 = vunpack.c.h.b16 %v306
        %v367 = vpack.c.b16 %v337, %v335
        %v368 = vpack.c.b16 %v338, %v336
        %v369 = vpack.c.b16 %v341, %v339
        %v370 = vpack.c.b16 %v342, %v340
        %v371 = vpack.c.b16 %v345, %v343
        %v372 = vpack.c.b16 %v346, %v344
        %v373 = vpack.c.b16 %v349, %v347
        %v374 = vpack.c.b16 %v350, %v348
        %v375 = vpack.c.b16 %v353, %v351
        %v376 = vpack.c.b16 %v354, %v352
        %v377 = vpack.c.b16 %v357, %v355
        %v378 = vpack.c.b16 %v358, %v356
        %v379 = vpack.c.b16 %v361, %v359
        %v380 = vpack.c.b16 %v362, %v360
        %v381 = vpack.c.b16 %v365, %v363
        %v382 = vpack.c.b16 %v366, %v364
        %399 = vmatpush.bf16.msra.mxu0 %v381
        %400 = vmatpush.bf16.msra.mxu0 %v379
        %401 = vmatpush.bf16.msra.mxu0 %v377
        %402 = vmatpush.bf16.msra.mxu0 %v375
        %403 = vmatpush.bf16.msra.mxu0 %v373
        %404 = vmatpush.bf16.msra.mxu0 %v371
        %405 = vmatpush.bf16.msra.mxu0 %v369
        %406 = vmatpush.bf16.msra.mxu0 %v367
        %407 = vmatmul.bf16.gmra.mxu0 %v315
        %v408 = vpop.f32.mrf.mxu0
        %v409 = vadd.f32 0.0, %v408
        %v410 = vpop.f32.mrf.mxu0
        %v411 = vadd.f32 0.0, %v410
        %412 = vmatmul.bf16.gmra.mxu0 %v316
        %v413 = vpop.f32.mrf.mxu0
        %v414 = vadd.f32 0.0, %v413
        %v415 = vpop.f32.mrf.mxu0
        %v416 = vadd.f32 0.0, %v415
        %417 = vdwg.mxu0
        %418 = vmatpush.bf16.msra.mxu0 %v382
        %419 = vmatpush.bf16.msra.mxu0 %v380
        %420 = vmatpush.bf16.msra.mxu0 %v378
        %421 = vmatpush.bf16.msra.mxu0 %v376
        %422 = vmatpush.bf16.msra.mxu0 %v374
        %423 = vmatpush.bf16.msra.mxu0 %v372
        %424 = vmatpush.bf16.msra.mxu0 %v370
        %425 = vmatpush.bf16.msra.mxu0 %v368
        %426 = vmatmul.bf16.gmra.mxu0 %v315
        %v427 = vpop.f32.mrf.mxu0
        %v428 = vadd.f32 0.0, %v427
        %v429 = vpop.f32.mrf.mxu0
        %v430 = vadd.f32 0.0, %v429
        %431 = vmatmul.bf16.gmra.mxu0 %v316
        %v432 = vpop.f32.mrf.mxu0
        %v433 = vadd.f32 0.0, %v432
        %v434 = vpop.f32.mrf.mxu0
        %v435 = vadd.f32 0.0, %v434
        %436 = vdwg.mxu0
        %v437 = vxor.u32 %v409, 2147483648
        %v438 = vxor.u32 %v428, 2147483648
        %v439 = vxor.u32 %v411, 2147483648
        %v440 = vxor.u32 %v430, 2147483648
        %v441 = vxor.u32 %v414, 2147483648
        %v442 = vxor.u32 %v433, 2147483648
        %v443 = vmul.f32 %v437, 1.442695
        %v444 = vpow.pop %v443
        %v445 = vmul.f32 %v438, 1.442695
        %v446 = vpow.pop %v445
        %v447 = vmul.f32 %v439, 1.442695
        %v448 = vpow.pop %v447
        %v449 = vmul.f32 %v440, 1.442695
        %v450 = vpow.pop %v449
        %v451 = vmul.f32 %v441, 1.442695
        %v452 = vpow.pop %v451
        %v453 = vmul.f32 %v442, 1.442695
        %v454 = vpow.pop %v453
        %v455 = vadd.f32 %v444, 1.0
        %v456 = vadd.f32 %v446, 1.0
        %v457 = vadd.f32 %v448, 1.0
        %v458 = vadd.f32 %v450, 1.0
        %v459 = vadd.f32 %v452, 1.0
        %v460 = vadd.f32 %v454, 1.0
        %v461 = vrcp.pop %v455
        %v462 = vmul.f32 %v455, %v461
        %v463 = vsub.f32 1.0, %v462
        %v464 = vmul.f32 %v461, %v463
        %v465 = vadd.f32 %v461, %v464
        %vm466 = vweird.f32 %v455
        %vm467 = vweird.f32 %v461
        %vm468 = vmor %vm466, %vm467
        %v469 = vsel %vm468, %v461, %v465
        %v470 = vand.u32 2147483647, %v455
        %vm471 = vcmp.eq.f32.partialorder %v470, 8.507059e+37
        %v472 = vand.u32 %v455, 2147483648
        %v473 = vor.u32 1.1754944e-38, %v472
        %v474 = vsel %vm471, %v473, %v469
        %v475 = vmul.f32 1.0, %v474
        %v476 = vrcp.pop %v456
        %v477 = vmul.f32 %v456, %v476
        %v478 = vsub.f32 1.0, %v477
        %v479 = vmul.f32 %v476, %v478
        %v480 = vadd.f32 %v476, %v479
        %vm481 = vweird.f32 %v456
        %vm482 = vweird.f32 %v476
        %vm483 = vmor %vm481, %vm482
        %v484 = vsel %vm483, %v476, %v480
        %v485 = vand.u32 2147483647, %v456
        %vm486 = vcmp.eq.f32.partialorder %v485, 8.507059e+37
        %v487 = vand.u32 %v456, 2147483648
        %v488 = vor.u32 1.1754944e-38, %v487
        %v489 = vsel %vm486, %v488, %v484
        %v490 = vmul.f32 1.0, %v489
        %v491 = vrcp.pop %v457
        %v492 = vmul.f32 %v457, %v491
        %v493 = vsub.f32 1.0, %v492
        %v494 = vmul.f32 %v491, %v493
        %v495 = vadd.f32 %v491, %v494
        %vm496 = vweird.f32 %v457
        %vm497 = vweird.f32 %v491
        %vm498 = vmor %vm496, %vm497
        %v499 = vsel %vm498, %v491, %v495
        %v500 = vand.u32 2147483647, %v457
        %vm501 = vcmp.eq.f32.partialorder %v500, 8.507059e+37
        %v502 = vand.u32 %v457, 2147483648
        %v503 = vor.u32 1.1754944e-38, %v502
        %v504 = vsel %vm501, %v503, %v499
        %v505 = vmul.f32 1.0, %v504
        %v506 = vrcp.pop %v458
        %v507 = vmul.f32 %v458, %v506
        %v508 = vsub.f32 1.0, %v507
        %v509 = vmul.f32 %v506, %v508
        %v510 = vadd.f32 %v506, %v509
        %vm511 = vweird.f32 %v458
        %vm512 = vweird.f32 %v506
        %vm513 = vmor %vm511, %vm512
        %v514 = vsel %vm513, %v506, %v510
        %v515 = vand.u32 2147483647, %v458
        %vm516 = vcmp.eq.f32.partialorder %v515, 8.507059e+37
        %v517 = vand.u32 %v458, 2147483648
        %v518 = vor.u32 1.1754944e-38, %v517
        %v519 = vsel %vm516, %v518, %v514
        %v520 = vmul.f32 1.0, %v519
        %v521 = vrcp.pop %v459
        %v522 = vmul.f32 %v459, %v521
        %v523 = vsub.f32 1.0, %v522
        %v524 = vmul.f32 %v521, %v523
        %v525 = vadd.f32 %v521, %v524
        %vm526 = vweird.f32 %v459
        %vm527 = vweird.f32 %v521
        %vm528 = vmor %vm526, %vm527
        %v529 = vsel %vm528, %v521, %v525
        %v530 = vand.u32 2147483647, %v459
        %vm531 = vcmp.eq.f32.partialorder %v530, 8.507059e+37
        %v532 = vand.u32 %v459, 2147483648
        %v533 = vor.u32 1.1754944e-38, %v532
        %v534 = vsel %vm531, %v533, %v529
        %v535 = vmul.f32 1.0, %v534
        %v536 = vrcp.pop %v460
        %v537 = vmul.f32 %v460, %v536
        %v538 = vsub.f32 1.0, %v537
        %v539 = vmul.f32 %v536, %v538
        %v540 = vadd.f32 %v536, %v539
        %vm541 = vweird.f32 %v460
        %vm542 = vweird.f32 %v536
        %vm543 = vmor %vm541, %vm542
        %v544 = vsel %vm543, %v536, %v540
        %v545 = vand.u32 2147483647, %v460
        %vm546 = vcmp.eq.f32.partialorder %v545, 8.507059e+37
        %v547 = vand.u32 %v460, 2147483648
        %v548 = vor.u32 1.1754944e-38, %v547
        %v549 = vsel %vm546, %v548, %v544
        %v550 = vmul.f32 1.0, %v549
        %v551 = vtanh.pop %v416
        %v552 = vtanh.pop %v435
        %v553 = vld [vmem:[%s247] sm:$0xff]
        %v554 = vld [vmem:[%s247 + $0x8] sm:$0xff]
        %v555 = vmul.f32 %v505, %v553
        %v556 = vmul.f32 %v520, %v554
        %v557 = vmul.f32 %v475, %v551
        %v558 = vmul.f32 %v490, %v552
        %v559 = vadd.f32 %v555, %v557
        %v560 = vadd.f32 %v556, %v558
        %v561 = vtanh.pop %v559
        %v562 = vtanh.pop %v560
        %v563 = vmul.f32 %v535, %v561
        %v564 = vmul.f32 %v550, %v562
        %565 = vst [vmem:[%s282] sm:$0xff] %v559
        %566 = vst [vmem:[%s282 + $0x8] sm:$0xff] %v560
        %567 = vst [vmem:[%s275] sm:$0xff] %v563
        %568 = vst [vmem:[%s275 + $0x8] sm:$0xff] %v564
        %s569 = sand.u32 %s107, 1
        %s570 = scalar_lea.sflag [#allocation4], %s569
        %s571 = sand.u32 %s107, 1
        %s572 = smul.addr %s571, 16
        %s573 = scalar_lea.vmem [#allocation8], %s572
        %s574 = sand.u32 %s133, 1
        %s575 = scalar_lea.sflag [#allocation10], %s574
        %s576 = sand.u32 %s133, 1
        %s577 = smul.addr %s576, 16
        %s578 = scalar_lea.vmem [#allocation9], %s577
        // Predicated region
        $region45: #{tpu_custom_call.1} parent=31 // pred_check
          %p579 = pneg %p117
        $region46: #{tpu_custom_call.1} parent=31 // pred_check_branch
          %581 = sbr.rel (%p579) target = $region48
        $region47: #{tpu_custom_call.1} parent=31 // pred_region
          %s582 = smul.u32 2, %s26
          %584 = vsyncadd %s570, 0
          %s585 = smul.addr %s582, 8
          %s586 = scalar_lea.hbm %s3, %s585
          %s588 = sshll.u32 %s573, 4
          %s589 = int_to_ptr.vmem [resolvable:$true] %s588
          %s590 = sshll.u32 %s586, 4
          %s591 = int_to_ptr.hbm [resolvable:$true] %s590
          %593 = dma.vmem_to_hbm [thread:$0]  %s589, 256, %s591, %s570
        $region48: #{tpu_custom_call.1} parent=31 // pred_fallthru
          _
        // Predicated region
        $region49: #{tpu_custom_call.1} parent=31 // pred_check
          %p594 = pneg %p143
        $region50: #{tpu_custom_call.1} parent=31 // pred_check_branch
          %596 = sbr.rel (%p594) target = $region52
        $region51: #{tpu_custom_call.1} parent=31 // pred_region
          %s597 = smul.u32 2, %s26
          %599 = vsyncadd %s575, 0
          %s600 = smul.addr %s597, 8
          %s601 = scalar_lea.hbm %s4, %s600
          %s603 = sshll.u32 %s578, 4
          %s604 = int_to_ptr.vmem [resolvable:$true] %s603
          %s605 = sshll.u32 %s601, 4
          %s606 = int_to_ptr.hbm [resolvable:$true] %s605
          %608 = dma.vmem_to_hbm [thread:$0]  %s604, 256, %s606, %s575
        $region52: #{tpu_custom_call.1} parent=31 // pred_fallthru
          _
      $region32: #{tpu_custom_call.1} parent=5 // pred_fallthru
        _
      %p609 = scmp.le.s32.totalorder 2, %s21
      // Predicated region
      $region53: #{tpu_custom_call.1} parent=5 // pred_check
        %p610 = pneg %p609
      $region54: #{tpu_custom_call.1} parent=5 // pred_check_branch
        %612 = sbr.rel (%p610) target = $region56
      $region55: #{tpu_custom_call.1} parent=5 // pred_region
        %s613 = ssub.s32 %s21, 2
        // Predicated region
        $region57: #{tpu_custom_call.1} parent=55 // pred_check
          %p614 = pneg %p123
        $region58: #{tpu_custom_call.1} parent=55 // pred_check_branch
          %616 = sbr.rel (%p614) target = $region60
        $region59: #{tpu_custom_call.1} parent=55 // pred_region
          %s617 = sand.u32 %s108, 1
          %s618 = scalar_lea.sflag [#allocation4], %s617
          %s619 = sand.u32 %s108, 1
          %s620 = smul.addr %s619, 16
          %s621 = scalar_lea.vmem [#allocation8], %s620
          %623 = dma.done %s618, 256
        $region60: #{tpu_custom_call.1} parent=55 // pred_fallthru
          _
        // Predicated region
        $region61: #{tpu_custom_call.1} parent=55 // pred_check
          %p624 = pneg %p149
        $region62: #{tpu_custom_call.1} parent=55 // pred_check_branch
          %626 = sbr.rel (%p624) target = $region64
        $region63: #{tpu_custom_call.1} parent=55 // pred_region
          %s627 = sand.u32 %s134, 1
          %s628 = scalar_lea.sflag [#allocation10], %s627
          %s629 = sand.u32 %s134, 1
          %s630 = smul.addr %s629, 16
          %s631 = scalar_lea.vmem [#allocation9], %s630
          %633 = dma.done %s628, 256
        $region64: #{tpu_custom_call.1} parent=55 // pred_fallthru
          _
      $region56: #{tpu_custom_call.1} parent=5 // pred_fallthru
        _
    $region6: #{tpu_custom_call.1} parent=1 // loop_footer
      %s25 = sadd.s32 1, %s21
    $region7: #{tpu_custom_call.1} parent=1 // loop_footer_branch
      %20 = sbr.rel target = $region3
    $region8: #{tpu_custom_call.1} parent=1 // loop_exit
      _
    %634 = vsyncpa [#allocation3], 1
    %s635 = scalar_lea.sflag [#allocation3], 1
    %636 = vsyncpa %s635, 1
    %637 = vsyncpa [#allocation6], 1
    %s638 = scalar_lea.sflag [#allocation6], 1
    %639 = vsyncpa %s638, 1
    %640 = vsyncpa [#allocation4], 1
    %s641 = scalar_lea.sflag [#allocation4], 1
    %642 = vsyncpa %s641, 1
    %643 = vsyncpa [#allocation10], 1
    %s644 = scalar_lea.sflag [#allocation10], 1
    %645 = vsyncpa %s644, 1

</llo_original>
